<compile_context>
chip_gen: v5e
topology: v5e:2x2
jax: 0.10.0
libtpu: 0.0.40
codegen_flags: <defaults>
</compile_context>

<pallas_src>
import functools

import jax
import jax.numpy as jnp
import numpy as np
from jax.experimental import pallas as pl
from jax.experimental.pallas import tpu as pltpu


def _fixed_loss_kernel(out_ref, gt_ref, est_ref, gtn_ref, wh_ref, ww_ref,
                       main_sum_ref, asym_sum_ref,
                       acc_main_ref, acc_asym_ref, *,
                       width, l_pad, block_rows):
    step = pl.program_id(1)
    last = pl.num_programs(1) - 1

    @pl.when(step == 0)
    def _init():
        acc_main_ref[...] = jnp.zeros_like(acc_main_ref)
        acc_asym_ref[...] = jnp.zeros_like(acc_asym_ref)

    out_img = out_ref[...].astype(jnp.float32)
    gt_img = gt_ref[...].astype(jnp.float32)
    est = est_ref[...].astype(jnp.float32)
    gtn = gtn_ref[...].astype(jnp.float32)

    # --- term 1: (out - gt)^2, un-normalized (1/N applied once in wrapper) ---
    d_img = out_img - gt_img
    main_c = d_img * d_img

    # --- term 3: TV of est_noise via lane rolls; validity + scaling live in
    # the two resident (1, L_pad) weight rows (broadcast multiplies only). ---
    h_next = pltpu.roll(est, l_pad - width, axis=1)   # est[col + W] -> col
    w_next = pltpu.roll(est, l_pad - 1, axis=1)       # est[col + 1] -> col
    h_diff = h_next - est
    w_diff = w_next - est
    main_c = main_c + h_diff * h_diff * wh_ref[...] + w_diff * w_diff * ww_ref[...]

    # --- term 2: |0.3 - relu(gt_noise - est)| * (gt_noise - est)^2 ---
    d_n = gtn - est
    asym_c = jnp.abs(0.3 - jnp.maximum(d_n, 0.0)) * (d_n * d_n)

    # Fold the (block_rows, L_pad) contributions into (8, L_pad) accumulators
    # (pure VPU adds; the single cross-lane reduce happens in the epilogue).
    folds = block_rows // 8
    acc_main_ref[...] += main_c.reshape(folds, 8, l_pad).sum(axis=0)
    acc_asym_ref[...] += asym_c.reshape(folds, 8, l_pad).sum(axis=0)

    @pl.when(step == last)
    def _finalize():
        main_sum_ref[...] = jnp.full(main_sum_ref.shape,
                                     jnp.sum(acc_main_ref[...]),
                                     dtype=main_sum_ref.dtype)
        asym_sum_ref[...] = jnp.full(asym_sum_ref.shape,
                                     jnp.sum(acc_asym_ref[...]),
                                     dtype=asym_sum_ref.dtype)


def _round_up(x, m):
    return (x + m - 1) // m * m


def _cdiv(a, b):
    return -(-a // b)


def fixed_loss(out_image, gt_image, est_noise, gt_noise, if_asym, *,
               block_rows=None, num_splits=None, target_tile_bytes=4 << 20):
    """Pallas TPU implementation of fixed_loss.forward. Returns a scalar f32."""
    B, C, H, W = est_noise.shape
    N = B * C
    L = H * W
    L_pad = _round_up(L, 128)

    n_total = float(B * C * H * W)
    count_h = C * (H - 1) * W        # PyTorch _tensor_size excludes batch
    count_w = C * H * (W - 1)

    in_dtype = jnp.result_type(out_image.dtype, est_noise.dtype)
    itemsize = jnp.dtype(in_dtype).itemsize
    sub = {4: 8, 2: 16, 1: 32}.get(itemsize, 8)   # sublane tiling per dtype

    # --- generation-aware VMEM budget ------------------------------------
    try:
        vmem_cap = int(pltpu.get_tpu_info().vmem_capacity_bytes)
    except Exception:
        vmem_cap = 128 << 20
    vmem_budget = (vmem_cap * 3) // 4             # leave compiler headroom

    # --- row-block sizing -------------------------------------------------
    if block_rows is None:
        rows = max(sub, target_tile_bytes // (L_pad * itemsize))
        block_rows = int(rows) // sub * sub
    block_rows = max(sub, (int(block_rows) // sub) * sub)
    block_rows = min(block_rows, _round_up(N, sub))

    def _vmem_need(br):
        return (4 * 2 * br * L_pad * itemsize     # 4 inputs, double-buffered
                + 2 * 8 * L_pad * 4               # two (8, L_pad) accumulators
                + 2 * L_pad * 4                   # resident weight rows
                + (2 << 20))                      # outputs / compiler slack
    while block_rows > sub and _vmem_need(block_rows) > vmem_budget:
        block_rows = max(sub, (block_rows // 2) // sub * sub)

    total_blocks = _cdiv(N, block_rows)
    if num_splits is None:
        num_splits = 2 if total_blocks >= 2 else 1   # use both TCs on v7x
    num_splits = max(1, min(int(num_splits), total_blocks))
    blocks_per_split = _cdiv(total_blocks, num_splits)
    N_pad = num_splits * blocks_per_split * block_rows

    vmem_limit = int(min(max(_vmem_need(block_rows), 32 << 20), vmem_budget))

    # --- lane-dense (N_pad, L_pad) layout; zero rows/lanes contribute 0 ---
    def prep(x):
        x2 = jnp.reshape(x.astype(in_dtype), (N, L))
        return jnp.pad(x2, ((0, N_pad - N), (0, L_pad - L)))

    out2, gt2, est2, gtn2 = (prep(t) for t in
                             (out_image, gt_image, est_noise, gt_noise))

    # Resident TV weight rows: validity mask x (0.05 / count_*) x n_total, so
    # one 1/n_total in the wrapper normalizes MSE + TV together.
    col = np.arange(L_pad)
    h_scale = (0.05 * n_total / count_h) if count_h > 0 else 0.0
    w_scale = (0.05 * n_total / count_w) if count_w > 0 else 0.0
    wh = jnp.asarray(np.where(col < (H - 1) * W, h_scale, 0.0)
                     .astype(np.float32)[None, :])
    ww = jnp.asarray(np.where((col % W != W - 1) & (col < L), w_scale, 0.0)
                     .astype(np.float32)[None, :])

    kernel = functools.partial(_fixed_loss_kernel, width=W, l_pad=L_pad,
                               block_rows=block_rows)

    row_block = pl.BlockSpec((block_rows, L_pad),
                             lambda c, i: (c * blocks_per_split + i, 0))
    weight_block = pl.BlockSpec((1, L_pad), lambda c, i: (0, 0))
    scalar_out = pl.BlockSpec((1, 1, 1), lambda c, i: (c, 0, 0))

    main_sum, asym_sum = pl.pallas_call(
        kernel,
        out_shape=(jax.ShapeDtypeStruct((num_splits, 1, 1), jnp.float32),
                   jax.ShapeDtypeStruct((num_splits, 1, 1), jnp.float32)),
        grid=(num_splits, blocks_per_split),
        in_specs=[row_block, row_block, row_block, row_block,
                  weight_block, weight_block],
        out_specs=(scalar_out, scalar_out),
        scratch_shapes=[
            pltpu.VMEM((8, L_pad), jnp.float32),   # acc: mse + tv (folded)
            pltpu.VMEM((8, L_pad), jnp.float32),   # acc: asym (folded)
        ],
        compiler_params=pltpu.CompilerParams(
            dimension_semantics=("parallel", "arbitrary"),
            vmem_limit_bytes=vmem_limit,
        ),
    )(out2, gt2, est2, gtn2, wh, ww)

    inv_n = jnp.float32(1.0 / n_total)
    return (jnp.sum(main_sum) + if_asym * 0.5 * jnp.sum(asym_sum)) * inv_n


def fixed_loss_ref(out_image, gt_image, est_noise, gt_noise, if_asym):
    """Pure-JAX reference (mirror of the PyTorch forward)."""
    B, C, H, W = est_noise.shape
    count_h = C * (H - 1) * W
    count_w = C * H * (W - 1)
    h_tv = jnp.sum((est_noise[:, :, 1:, :] - est_noise[:, :, :H - 1, :]) ** 2)
    w_tv = jnp.sum((est_noise[:, :, :, 1:] - est_noise[:, :, :, :W - 1]) ** 2)
    tvloss = h_tv / count_h + w_tv / count_w
    mse = jnp.mean((out_image - gt_image) ** 2)
    asym = jnp.mean(jnp.abs(0.3 - jax.nn.relu(gt_noise - est_noise))
                    * (est_noise - gt_noise) ** 2)
    return mse + if_asym * 0.5 * asym + 0.05 * tvloss


if __name__ == "__main__":
    key = jax.random.PRNGKey(0)

    def make_inputs(key, B, C, H, W):
        k1, k2, k3, k4, key = jax.random.split(key, 5)
        out_image = jax.random.normal(k1, (B, C, H, W), dtype=jnp.float32)
        gt_image = jax.random.normal(k2, (B, C, H, W), dtype=jnp.float32)
        est_noise = 0.1 * jax.random.normal(k3, (B, C, H, W), dtype=jnp.float32)
        gt_noise = 0.1 * jax.random.normal(k4, (B, C, H, W), dtype=jnp.float32)
        return (out_image, gt_image, est_noise, gt_noise), key

    # --- test 1: canonical small CBDNet-style shapes (single block) -------
    (o, g, e, n), key = make_inputs(key, 2, 4, 16, 16)
    loss = jax.block_until_ready(fixed_loss(o, g, e, n, 1.0))
    ref = fixed_loss_ref(o, g, e, n, 1.0)
    assert jnp.allclose(loss, ref, rtol=1e-4, atol=1e-5), (loss, ref)

    # --- test 2: multi-block grid, partial (padded) last block, 2 splits --
    (o, g, e, n), key = make_inputs(key, 3, 7, 16, 16)   # B*C = 21 rows
    loss2 = jax.block_until_ready(fixed_loss(o, g, e, n, 0.5, block_rows=8))
    ref2 = fixed_loss_ref(o, g, e, n, 0.5)
    assert jnp.allclose(loss2, ref2, rtol=1e-4, atol=1e-5), (loss2, ref2)

    # --- test 3: non-128-multiple H*W (lane padding) and if_asym = 0 -------
    (o, g, e, n), key = make_inputs(key, 2, 3, 10, 12)   # L = 120 -> L_pad = 128
    loss3 = jax.block_until_ready(fixed_loss(o, g, e, n, 0.0))
    ref3 = fixed_loss_ref(o, g, e, n, 0.0)
    assert jnp.allclose(loss3, ref3, rtol=1e-4, atol=1e-5), (loss3, ref3)

    print("KERNEL_OK")
</pallas_src>

<mosaic_0001>
module attributes {stable_mosaic.version = 11 : i64} {
  func.func @_fixed_loss_kernel(%arg0: i32, %arg1: i32, %arg2: memref<8x256xf32, #tpu.memory_space<vmem>>, %arg3: memref<8x256xf32, #tpu.memory_space<vmem>>, %arg4: memref<8x256xf32, #tpu.memory_space<vmem>>, %arg5: memref<8x256xf32, #tpu.memory_space<vmem>>, %arg6: memref<1x256xf32, #tpu.memory_space<vmem>>, %arg7: memref<1x256xf32, #tpu.memory_space<vmem>>, %arg8: memref<1x1x1xf32, #tpu.memory_space<vmem>>, %arg9: memref<1x1x1xf32, #tpu.memory_space<vmem>>, %arg10: memref<8x256xf32, #tpu.memory_space<vmem>>, %arg11: memref<8x256xf32, #tpu.memory_space<vmem>>) attributes {dimension_semantics = [#tpu.dimension_semantics<parallel>, #tpu.dimension_semantics<arbitrary>], iteration_bounds = array<i64: 1, 1>, scalar_prefetch = 0 : i64, scratch_operands = 2 : i64, tpu.core_type = #tpu.core_type<tc>, window_params = [{transform_indices = @transform_0, window_bounds = array<i64: 8, 256>}, {transform_indices = @transform_1, window_bounds = array<i64: 8, 256>}, {transform_indices = @transform_2, window_bounds = array<i64: 8, 256>}, {transform_indices = @transform_3, window_bounds = array<i64: 8, 256>}, {pipeline_mode = #tpu.pipeline_mode<synchronous>, transform_indices = @transform_4, window_bounds = array<i64: 1, 256>}, {pipeline_mode = #tpu.pipeline_mode<synchronous>, transform_indices = @transform_5, window_bounds = array<i64: 1, 256>}, {transform_indices = @transform_6, window_bounds = array<i64: 1, 1, 1>}, {transform_indices = @transform_7, window_bounds = array<i64: 1, 1, 1>}]} {
    %c0_i32 = arith.constant 0 : i32
    %0 = arith.cmpi eq, %arg1, %c0_i32 : i32
    %1 = arith.extui %0 : i1 to i32
    %c0_i32_0 = arith.constant 0 : i32
    %2 = arith.cmpi ne, %1, %c0_i32_0 : i32
    scf.if %2 {
      %cst_25 = arith.constant 0.000000e+00 : f32
      %44 = vector.broadcast %cst_25 : f32 to vector<8x256xf32>
      %c0_26 = arith.constant 0 : index
      %c0_27 = arith.constant 0 : index
      %45 = vector.load %arg10[%c0_26, %c0_27] : memref<8x256xf32, #tpu.memory_space<vmem>>, vector<8x256xf32>
      tpu.vector_store %arg10[%c0_26, %c0_27], %44 {strides = array<i32>} : memref<8x256xf32, #tpu.memory_space<vmem>>, vector<8x256xf32>,
      %cst_28 = arith.constant 0.000000e+00 : f32
      %46 = vector.broadcast %cst_28 : f32 to vector<8x256xf32>
      %c0_29 = arith.constant 0 : index
      %c0_30 = arith.constant 0 : index
      %47 = vector.load %arg11[%c0_29, %c0_30] : memref<8x256xf32, #tpu.memory_space<vmem>>, vector<8x256xf32>
      tpu.vector_store %arg11[%c0_29, %c0_30], %46 {strides = array<i32>} : memref<8x256xf32, #tpu.memory_space<vmem>>, vector<8x256xf32>,
    } else {
    }
    %c0 = arith.constant 0 : index
    %c0_1 = arith.constant 0 : index
    %3 = vector.load %arg2[%c0, %c0_1] : memref<8x256xf32, #tpu.memory_space<vmem>>, vector<8x256xf32>
    %c0_2 = arith.constant 0 : index
    %c0_3 = arith.constant 0 : index
    %4 = vector.load %arg3[%c0_2, %c0_3] : memref<8x256xf32, #tpu.memory_space<vmem>>, vector<8x256xf32>
    %c0_4 = arith.constant 0 : index
    %c0_5 = arith.constant 0 : index
    %5 = vector.load %arg4[%c0_4, %c0_5] : memref<8x256xf32, #tpu.memory_space<vmem>>, vector<8x256xf32>
    %c0_6 = arith.constant 0 : index
    %c0_7 = arith.constant 0 : index
    %6 = vector.load %arg5[%c0_6, %c0_7] : memref<8x256xf32, #tpu.memory_space<vmem>>, vector<8x256xf32>
    %7 = arith.subf %3, %4 : vector<8x256xf32>
    %8 = arith.mulf %7, %7 : vector<8x256xf32>
    %c240_i32 = arith.constant 240 : i32
    %9 = tpu.dynamic_rotate %5 by %c240_i32 dim 1 : vector<8x256xf32>, i32 -> vector<8x256xf32>
    %c255_i32 = arith.constant 255 : i32
    %10 = tpu.dynamic_rotate %5 by %c255_i32 dim 1 : vector<8x256xf32>, i32 -> vector<8x256xf32>
    %11 = arith.subf %9, %5 : vector<8x256xf32>
    %12 = arith.subf %10, %5 : vector<8x256xf32>
    %13 = arith.mulf %11, %11 : vector<8x256xf32>
    %c0_8 = arith.constant 0 : index
    %c0_9 = arith.constant 0 : index
    %14 = vector.load %arg6[%c0_8, %c0_9] : memref<1x256xf32, #tpu.memory_space<vmem>>, vector<1x256xf32>
    %15 = vector.broadcast %14 : vector<1x256xf32> to vector<8x256xf32>
    %16 = arith.mulf %13, %15 : vector<8x256xf32>
    %17 = arith.addf %8, %16 : vector<8x256xf32>
    %18 = arith.mulf %12, %12 : vector<8x256xf32>
    %c0_10 = arith.constant 0 : index
    %c0_11 = arith.constant 0 : index
    %19 = vector.load %arg7[%c0_10, %c0_11] : memref<1x256xf32, #tpu.memory_space<vmem>>, vector<1x256xf32>
    %20 = vector.broadcast %19 : vector<1x256xf32> to vector<8x256xf32>
    %21 = arith.mulf %18, %20 : vector<8x256xf32>
    %22 = arith.addf %17, %21 : vector<8x256xf32>
    %23 = arith.subf %6, %5 : vector<8x256xf32>
    %cst = arith.constant 0.000000e+00 : f32
    %24 = vector.broadcast %cst : f32 to vector<8x256xf32>
    %25 = arith.maximumf %23, %24 : vector<8x256xf32>
    %cst_12 = arith.constant 3.000000e-01 : f32
    %26 = vector.broadcast %cst_12 : f32 to vector<8x256xf32>
    %27 = arith.subf %26, %25 : vector<8x256xf32>
    %28 = math.absf %27 : vector<8x256xf32>
    %29 = arith.mulf %23, %23 : vector<8x256xf32>
    %30 = arith.mulf %28, %29 : vector<8x256xf32>
    %c0_13 = arith.constant 0 : index
    %c0_14 = arith.constant 0 : index
    %31 = vector.load %arg10[%c0_13, %c0_14] : memref<8x256xf32, #tpu.memory_space<vmem>>, vector<8x256xf32>
    %32 = vector.shape_cast %22 : vector<8x256xf32> to vector<1x8x256xf32>
    %cst_15 = arith.constant dense<0.000000e+00> : vector<8x256xf32>
    %33 = vector.multi_reduction <add>, %32, %cst_15 [0] : vector<1x8x256xf32> to vector<8x256xf32>
    %34 = arith.addf %31, %33 : vector<8x256xf32>
    %c0_16 = arith.constant 0 : index
    %c0_17 = arith.constant 0 : index
    %35 = vector.load %arg10[%c0_16, %c0_17] : memref<8x256xf32, #tpu.memory_space<vmem>>, vector<8x256xf32>
    tpu.vector_store %arg10[%c0_16, %c0_17], %34 {strides = array<i32>} : memref<8x256xf32, #tpu.memory_space<vmem>>, vector<8x256xf32>,
    %c0_18 = arith.constant 0 : index
    %c0_19 = arith.constant 0 : index
    %36 = vector.load %arg11[%c0_18, %c0_19] : memref<8x256xf32, #tpu.memory_space<vmem>>, vector<8x256xf32>
    %37 = vector.shape_cast %30 : vector<8x256xf32> to vector<1x8x256xf32>
    %cst_20 = arith.constant dense<0.000000e+00> : vector<8x256xf32>
    %38 = vector.multi_reduction <add>, %37, %cst_20 [0] : vector<1x8x256xf32> to vector<8x256xf32>
    %39 = arith.addf %36, %38 : vector<8x256xf32>
    %c0_21 = arith.constant 0 : index
    %c0_22 = arith.constant 0 : index
    %40 = vector.load %arg11[%c0_21, %c0_22] : memref<8x256xf32, #tpu.memory_space<vmem>>, vector<8x256xf32>
    tpu.vector_store %arg11[%c0_21, %c0_22], %39 {strides = array<i32>} : memref<8x256xf32, #tpu.memory_space<vmem>>, vector<8x256xf32>,
    %c0_i32_23 = arith.constant 0 : i32
    %41 = arith.cmpi eq, %arg1, %c0_i32_23 : i32
    %42 = arith.extui %41 : i1 to i32
    %c0_i32_24 = arith.constant 0 : i32
    %43 = arith.cmpi ne, %42, %c0_i32_24 : i32
    scf.if %43 {
      %c0_25 = arith.constant 0 : index
      %c0_26 = arith.constant 0 : index
      %44 = vector.load %arg10[%c0_25, %c0_26] : memref<8x256xf32, #tpu.memory_space<vmem>>, vector<8x256xf32>
      %45 = vector.shape_cast %44 : vector<8x256xf32> to vector<1x8x256xf32>
      %cst_27 = arith.constant dense<0.000000e+00> : vector<1xf32>
      %46 = vector.multi_reduction <add>, %45, %cst_27 [1, 2] : vector<1x8x256xf32> to vector<1xf32>
      %47 = vector.shape_cast %46 : vector<1xf32> to vector<1x1x1xf32>
      %48 = vector.extract %47[0, 0, 0] : f32 from vector<1x1x1xf32>
      %49 = vector.broadcast %48 : f32 to vector<1x1x1xf32>
      %c0_28 = arith.constant 0 : index
      %c0_29 = arith.constant 0 : index
      %c0_30 = arith.constant 0 : index
      %50 = vector.load %arg8[%c0_28, %c0_29, %c0_30] : memref<1x1x1xf32, #tpu.memory_space<vmem>>, vector<1x1x1xf32>
      tpu.vector_store %arg8[%c0_28, %c0_29, %c0_30], %49 {strides = array<i32>} : memref<1x1x1xf32, #tpu.memory_space<vmem>>, vector<1x1x1xf32>,
      %c0_31 = arith.constant 0 : index
      %c0_32 = arith.constant 0 : index
      %51 = vector.load %arg11[%c0_31, %c0_32] : memref<8x256xf32, #tpu.memory_space<vmem>>, vector<8x256xf32>
      %52 = vector.shape_cast %51 : vector<8x256xf32> to vector<1x8x256xf32>
      %cst_33 = arith.constant dense<0.000000e+00> : vector<1xf32>
      %53 = vector.multi_reduction <add>, %52, %cst_33 [1, 2] : vector<1x8x256xf32> to vector<1xf32>
      %54 = vector.shape_cast %53 : vector<1xf32> to vector<1x1x1xf32>
      %55 = vector.extract %54[0, 0, 0] : f32 from vector<1x1x1xf32>
      %56 = vector.broadcast %55 : f32 to vector<1x1x1xf32>
      %c0_34 = arith.constant 0 : index
      %c0_35 = arith.constant 0 : index
      %c0_36 = arith.constant 0 : index
      %57 = vector.load %arg9[%c0_34, %c0_35, %c0_36] : memref<1x1x1xf32, #tpu.memory_space<vmem>>, vector<1x1x1xf32>
      tpu.vector_store %arg9[%c0_34, %c0_35, %c0_36], %56 {strides = array<i32>} : memref<1x1x1xf32, #tpu.memory_space<vmem>>, vector<1x1x1xf32>,
    } else {
    }
    return
  }
  func.func @transform_0(%arg0: i32, %arg1: i32) -> (i32, i32) {
    %c1_i32 = arith.constant 1 : i32
    %0 = arith.muli %arg0, %c1_i32 : i32
    %1 = arith.addi %0, %arg1 : i32
    %c0_i32 = arith.constant 0 : i32
    %c0_i32_0 = arith.constant 0 : i32
    return %1, %c0_i32 : i32, i32
  }
  func.func @transform_1(%arg0: i32, %arg1: i32) -> (i32, i32) {
    %c1_i32 = arith.constant 1 : i32
    %0 = arith.muli %arg0, %c1_i32 : i32
    %1 = arith.addi %0, %arg1 : i32
    %c0_i32 = arith.constant 0 : i32
    %c0_i32_0 = arith.constant 0 : i32
    return %1, %c0_i32 : i32, i32
  }
  func.func @transform_2(%arg0: i32, %arg1: i32) -> (i32, i32) {
    %c1_i32 = arith.constant 1 : i32
    %0 = arith.muli %arg0, %c1_i32 : i32
    %1 = arith.addi %0, %arg1 : i32
    %c0_i32 = arith.constant 0 : i32
    %c0_i32_0 = arith.constant 0 : i32
    return %1, %c0_i32 : i32, i32
  }
  func.func @transform_3(%arg0: i32, %arg1: i32) -> (i32, i32) {
    %c1_i32 = arith.constant 1 : i32
    %0 = arith.muli %arg0, %c1_i32 : i32
    %1 = arith.addi %0, %arg1 : i32
    %c0_i32 = arith.constant 0 : i32
    %c0_i32_0 = arith.constant 0 : i32
    return %1, %c0_i32 : i32, i32
  }
  func.func @transform_4(%arg0: i32, %arg1: i32) -> (i32, i32) {
    %c0_i32 = arith.constant 0 : i32
    %c0_i32_0 = arith.constant 0 : i32
    %c0_i32_1 = arith.constant 0 : i32
    return %c0_i32, %c0_i32_0 : i32, i32
  }
  func.func @transform_5(%arg0: i32, %arg1: i32) -> (i32, i32) {
    %c0_i32 = arith.constant 0 : i32
    %c0_i32_0 = arith.constant 0 : i32
    %c0_i32_1 = arith.constant 0 : i32
    return %c0_i32, %c0_i32_0 : i32, i32
  }
  func.func @transform_6(%arg0: i32, %arg1: i32) -> (i32, i32, i32) {
    %c0_i32 = arith.constant 0 : i32
    %c0_i32_0 = arith.constant 0 : i32
    %c0_i32_1 = arith.constant 0 : i32
    return %arg0, %c0_i32, %c0_i32_0 : i32, i32, i32
  }
  func.func @transform_7(%arg0: i32, %arg1: i32) -> (i32, i32, i32) {
    %c0_i32 = arith.constant 0 : i32
    %c0_i32_0 = arith.constant 0 : i32
    %c0_i32_1 = arith.constant 0 : i32
    return %arg0, %c0_i32, %c0_i32_0 : i32, i32, i32
  }
}

</mosaic_0001>

<llo_original>
// kernel: tpu_custom_call.1
$region0: #{tpu_custom_call.1}
  #allocation0 [shape = 'u32[]', space=smem, size = 0x4, offset = 0x4, fixed_abs, tag = 'smem constant byte address 0x4 - core index']
  #allocation1 [shape = 'u32[72,128]{1,0:T(1,128)}', space=vmem, size = 0x9000, scoped, tag = 'internal scratch']
  #allocation2 [shape = 'f32[8,256]{1,0:T(8,128)}', space=vmem, size = 0x2000, scoped, tag = 'scratch operand']
  #allocation3 [shape = 'f32[8,256]{1,0:T(8,128)}', space=vmem, size = 0x2000, scoped, tag = 'scratch operand']
  %s0 = inlined_call_operand.hbm [shape: f32[8,256], index: 0, kind: input, shape index: {}]
  %s1 = inlined_call_operand.hbm [shape: f32[8,256], index: 1, kind: input, shape index: {}]
  %s2 = inlined_call_operand.hbm [shape: f32[8,256], index: 2, kind: input, shape index: {}]
  %s3 = inlined_call_operand.hbm [shape: f32[8,256], index: 3, kind: input, shape index: {}]
  %s4 = inlined_call_operand.vmem [shape: f32[1,256], index: 4, kind: input, shape index: {}]
  %s5 = inlined_call_operand.vmem [shape: f32[1,256], index: 5, kind: input, shape index: {}]
  %s6 = inlined_call_operand.hbm [shape: f32[1,1,1], index: 6, kind: output, shape index: {0}]
  %s7 = inlined_call_operand.hbm [shape: f32[1,1,1], index: 7, kind: output, shape index: {1}]
  %8 = xla_tuple %s6, %s7
  %s9 = sld [smem:[#allocation0]]
  $region66: #{tpu_custom_call.1} parent=0
    _
  %s11 = ssub.s32 1, %s9
  %s12 = scalar_select 0, %s11, %s9
  $region1: #{tpu_custom_call.1} parent=0
    #allocation4 [shape = 'u8[8192]{0}', space=vmem, size = 0x2000, scoped, tag = 'input window, operand 0, single buffered']
    #allocation5 [shape = 's32[1]{0}', space=sflag, size = 0x4, scoped, tag = 'scoped memory for tpu_custom_call.1']
    #allocation6 [shape = 's32[1]{0}', space=sflag, size = 0x4, scoped, tag = 'scoped memory for tpu_custom_call.1']
    #allocation7 [shape = 'u8[8192]{0}', space=vmem, size = 0x2000, scoped, tag = 'input window, operand 1, single buffered']
    #allocation8 [shape = 's32[1]{0}', space=sflag, size = 0x4, scoped, tag = 'scoped memory for tpu_custom_call.1']
    #allocation9 [shape = 'u8[8192]{0}', space=vmem, size = 0x2000, scoped, tag = 'input window, operand 2, single buffered']
    #allocation10 [shape = 'u8[8192]{0}', space=vmem, size = 0x2000, scoped, tag = 'input window, operand 3, single buffered']
    #allocation11 [shape = 's32[1]{0}', space=sflag, size = 0x4, scoped, tag = 'scoped memory for tpu_custom_call.1']
    #allocation12 [shape = 'u8[512]{0}', space=vmem, size = 0x400, scoped, tag = 'output window, operand 0, single buffered']
    #allocation13 [shape = 'u8[512]{0}', space=vmem, size = 0x400, scoped, tag = 'output window, operand 1, single buffered']
    #allocation14 [shape = 's32[1]{0}', space=sflag, size = 0x4, scoped, tag = 'scoped memory for tpu_custom_call.1']
    %13 = vsyncpa [#allocation5], 0
    %14 = vsyncpa [#allocation8], 0
    %15 = vsyncpa [#allocation11], 0
    %16 = vsyncpa [#allocation6], 0
    %17 = vsyncpa [#allocation14], 0
    // Predicated region
    $region2: #{tpu_custom_call.1} parent=1 // pred_check
      _
    $region3: #{tpu_custom_call.1} parent=1 // pred_check_branch
      %19 = sbr.rel (0) target = $region5
    $region4: #{tpu_custom_call.1} parent=1 // pred_region
      %s20 = sadd.s32 0, 0
      %22 = vsyncadd [#allocation5], 0
      %s23 = smul.addr %s20, 2
      %s24 = smul.addr %s23, 8
      %s25 = scalar_lea.hbm %s0, %s24
      %s27 = sshll.u32 %s25, 4
      %s28 = int_to_ptr.hbm [resolvable:$true] %s27
      %s29 = sshll.u32 [#allocation4], 4
      %s30 = int_to_ptr.vmem [resolvable:$true] %s29
      %32 = dma.hbm_to_vmem [thread:$0]  %s28, 256, %s30, [#allocation5]
    $region5: #{tpu_custom_call.1} parent=1 // pred_fallthru
      _
    // Predicated region
    $region6: #{tpu_custom_call.1} parent=1 // pred_check
      _
    $region7: #{tpu_custom_call.1} parent=1 // pred_check_branch
      %34 = sbr.rel (0) target = $region9
    $region8: #{tpu_custom_call.1} parent=1 // pred_region
      %s35 = sadd.s32 0, 0
      %37 = vsyncadd [#allocation8], 0
      %s38 = smul.addr %s35, 2
      %s39 = smul.addr %s38, 8
      %s40 = scalar_lea.hbm %s1, %s39
      %s42 = sshll.u32 %s40, 4
      %s43 = int_to_ptr.hbm [resolvable:$true] %s42
      %s44 = sshll.u32 [#allocation7], 4
      %s45 = int_to_ptr.vmem [resolvable:$true] %s44
      %47 = dma.hbm_to_vmem [thread:$0]  %s43, 256, %s45, [#allocation8]
    $region9: #{tpu_custom_call.1} parent=1 // pred_fallthru
      _
    // Predicated region
    $region10: #{tpu_custom_call.1} parent=1 // pred_check
      _
    $region11: #{tpu_custom_call.1} parent=1 // pred_check_branch
      %49 = sbr.rel (0) target = $region13
    $region12: #{tpu_custom_call.1} parent=1 // pred_region
      %s50 = sadd.s32 0, 0
      %52 = vsyncadd [#allocation8], 0
      %s53 = smul.addr %s50, 2
      %s54 = smul.addr %s53, 8
      %s55 = scalar_lea.hbm %s2, %s54
      %s57 = sshll.u32 %s55, 4
      %s58 = int_to_ptr.hbm [resolvable:$true] %s57
      %s59 = sshll.u32 [#allocation9], 4
      %s60 = int_to_ptr.vmem [resolvable:$true] %s59
      %62 = dma.hbm_to_vmem [thread:$0]  %s58, 256, %s60, [#allocation8]
    $region13: #{tpu_custom_call.1} parent=1 // pred_fallthru
      _
    // Predicated region
    $region14: #{tpu_custom_call.1} parent=1 // pred_check
      _
    $region15: #{tpu_custom_call.1} parent=1 // pred_check_branch
      %64 = sbr.rel (0) target = $region17
    $region16: #{tpu_custom_call.1} parent=1 // pred_region
      %s65 = sadd.s32 0, 0
      %67 = vsyncadd [#allocation11], 0
      %s68 = smul.addr %s65, 2
      %s69 = smul.addr %s68, 8
      %s70 = scalar_lea.hbm %s3, %s69
      %s72 = sshll.u32 %s70, 4
      %s73 = int_to_ptr.hbm [resolvable:$true] %s72
      %s74 = sshll.u32 [#allocation10], 4
      %s75 = int_to_ptr.vmem [resolvable:$true] %s74
      %77 = dma.hbm_to_vmem [thread:$0]  %s73, 256, %s75, [#allocation11]
    $region17: #{tpu_custom_call.1} parent=1 // pred_fallthru
      _
    // Predicated region
    $region18: #{tpu_custom_call.1} parent=1 // pred_check
      _
    $region19: #{tpu_custom_call.1} parent=1 // pred_check_branch
      %79 = sbr.rel (0) target = $region21
    $region20: #{tpu_custom_call.1} parent=1 // pred_region
      _
    $region21: #{tpu_custom_call.1} parent=1 // pred_fallthru
      _
    // Predicated region
    $region22: #{tpu_custom_call.1} parent=1 // pred_check
      _
    $region23: #{tpu_custom_call.1} parent=1 // pred_check_branch
      %81 = sbr.rel (0) target = $region25
    $region24: #{tpu_custom_call.1} parent=1 // pred_region
      _
    $region25: #{tpu_custom_call.1} parent=1 // pred_fallthru
      _
    // Predicated region
    $region26: #{tpu_custom_call.1} parent=1 // pred_check
      _
    $region27: #{tpu_custom_call.1} parent=1 // pred_check_branch
      %83 = sbr.rel (0) target = $region29
    $region28: #{tpu_custom_call.1} parent=1 // pred_region
      %85 = dma.done [#allocation5], 256
    $region29: #{tpu_custom_call.1} parent=1 // pred_fallthru
      _
    // Predicated region
    $region30: #{tpu_custom_call.1} parent=1 // pred_check
      _
    $region31: #{tpu_custom_call.1} parent=1 // pred_check_branch
      %87 = sbr.rel (0) target = $region33
    $region32: #{tpu_custom_call.1} parent=1 // pred_region
      %89 = dma.done [#allocation8], 256
    $region33: #{tpu_custom_call.1} parent=1 // pred_fallthru
      _
    // Predicated region
    $region34: #{tpu_custom_call.1} parent=1 // pred_check
      _
    $region35: #{tpu_custom_call.1} parent=1 // pred_check_branch
      %91 = sbr.rel (0) target = $region37
    $region36: #{tpu_custom_call.1} parent=1 // pred_region
      %93 = dma.done [#allocation8], 256
    $region37: #{tpu_custom_call.1} parent=1 // pred_fallthru
      _
    // Predicated region
    $region38: #{tpu_custom_call.1} parent=1 // pred_check
      _
    $region39: #{tpu_custom_call.1} parent=1 // pred_check_branch
      %95 = sbr.rel (0) target = $region41
    $region40: #{tpu_custom_call.1} parent=1 // pred_region
      %97 = dma.done [#allocation11], 256
    $region41: #{tpu_custom_call.1} parent=1 // pred_fallthru
      _
    %s98 = sadd.s32 0, 0
    %s99 = sadd.s32 0, 0
    %s100 = sadd.s32 0, 0
    %s101 = sadd.s32 0, 0
    %p102 = scmp.eq.s32.totalorder 0, 0
    // Predicated region
    $region42: #{tpu_custom_call.1} parent=1 // pred_check
      %p103 = pneg %p102
    $region43: #{tpu_custom_call.1} parent=1 // pred_check_branch
      %105 = sbr.rel (%p103) target = $region45
    $region44: #{tpu_custom_call.1} parent=1 // pred_region
      %106 = vst [vmem:[#allocation2] sm:$0xff] 0.0
      %107 = vst [vmem:[#allocation2 + $0x8] sm:$0xff] 0.0
      %108 = vst [vmem:[#allocation3] sm:$0xff] 0.0
      %109 = vst [vmem:[#allocation3 + $0x8] sm:$0xff] 0.0
    $region45: #{tpu_custom_call.1} parent=1 // pred_fallthru
      _
    %v110 = vld [vmem:[#allocation4] sm:$0xff]
    %v111 = vld [vmem:[#allocation4 + $0x8] sm:$0xff]
    %v112 = vld [vmem:[#allocation7] sm:$0xff]
    %v113 = vld [vmem:[#allocation7 + $0x8] sm:$0xff]
    %v114 = vld [vmem:[#allocation9] sm:$0xff]
    %v115 = vld [vmem:[#allocation9 + $0x8] sm:$0xff]
    %v116 = vld [vmem:[#allocation10] sm:$0xff]
    %v117 = vld [vmem:[#allocation10 + $0x8] sm:$0xff]
    %v118 = vsub.f32 %v110, %v112
    %v119 = vsub.f32 %v111, %v113
    %v120 = vmul.f32 %v118, %v118
    %v121 = vmul.f32 %v119, %v119
    %122 = vrot.lane.b32.xlu0 %v114, 112
    %v123 = vpop.permute.xlu0 %122
    %124 = vrot.lane.b32.xlu0 %v115, 112
    %v125 = vpop.permute.xlu0 %124
    %v126 = vlaneseq
    %v127 = vand.u32 %v126, 127
    %vm128 = vcmp.lt.s32.totalorder %v127, 112
    %v129 = vsel %vm128, %v123, %v125
    %v130 = vsel %vm128, %v125, %v123
    %131 = vrot.lane.b32.xlu0 %v114, 127
    %v132 = vpop.permute.xlu0 %131
    %133 = vrot.lane.b32.xlu0 %v115, 127
    %v134 = vpop.permute.xlu0 %133
    %vm135 = vcmp.lt.s32.totalorder %v127, 127
    %v136 = vsel %vm135, %v132, %v134
    %v137 = vsel %vm135, %v134, %v132
    %v138 = vsub.f32 %v129, %v114
    %v139 = vsub.f32 %v130, %v115
    %v140 = vsub.f32 %v136, %v114
    %v141 = vsub.f32 %v137, %v115
    %v142 = vmul.f32 %v138, %v138
    %v143 = vmul.f32 %v139, %v139
    %v144 = vld [vmem:[%s4] sm:$0x3]
    %v146 = vperm.slane %v144, 0
    %v147 = vperm.slane %v144, 1
    %v150 = vmul.f32 %v142, %v146
    %v151 = vmul.f32 %v143, %v147
    %v152 = vadd.f32 %v120, %v150
    %v153 = vadd.f32 %v121, %v151
    %v154 = vmul.f32 %v140, %v140
    %v155 = vmul.f32 %v141, %v141
    %v156 = vld [vmem:[%s5] sm:$0x3]
    %v158 = vperm.slane %v156, 0
    %v159 = vperm.slane %v156, 1
    %v162 = vmul.f32 %v154, %v158
    %v163 = vmul.f32 %v155, %v159
    %v164 = vadd.f32 %v152, %v162
    %v165 = vadd.f32 %v153, %v163
    %v166 = vsub.f32 %v116, %v114
    %v167 = vsub.f32 %v117, %v115
    %v168 = vmax.f32 %v166, 0.0
    %v169 = vmax.f32 %v167, 0.0
    %v170 = vsub.f32 0.3, %v168
    %v171 = vsub.f32 0.3, %v169
    %v172 = vand.u32 2147483647, %v170
    %v173 = vand.u32 2147483647, %v171
    %v174 = vmul.f32 %v166, %v166
    %v175 = vmul.f32 %v167, %v167
    %v176 = vmul.f32 %v172, %v174
    %v177 = vmul.f32 %v173, %v175
    %v178 = vld [vmem:[#allocation2] sm:$0xff]
    %v179 = vld [vmem:[#allocation2 + $0x8] sm:$0xff]
    %v180 = vadd.f32 %v164, 0.0
    %v181 = vadd.f32 %v165, 0.0
    %v182 = vadd.f32 %v178, %v180
    %v183 = vadd.f32 %v179, %v181
    %184 = vst [vmem:[#allocation2] sm:$0xff] %v182
    %185 = vst [vmem:[#allocation2 + $0x8] sm:$0xff] %v183
    %v186 = vld [vmem:[#allocation3] sm:$0xff]
    %v187 = vld [vmem:[#allocation3 + $0x8] sm:$0xff]
    %v188 = vadd.f32 %v176, 0.0
    %v189 = vadd.f32 %v177, 0.0
    %v190 = vadd.f32 %v186, %v188
    %v191 = vadd.f32 %v187, %v189
    %192 = vst [vmem:[#allocation3] sm:$0xff] %v190
    %193 = vst [vmem:[#allocation3 + $0x8] sm:$0xff] %v191
    // Predicated region
    $region46: #{tpu_custom_call.1} parent=1 // pred_check
      %p194 = pneg %p102
    $region47: #{tpu_custom_call.1} parent=1 // pred_check_branch
      %196 = sbr.rel (%p194) target = $region49
    $region48: #{tpu_custom_call.1} parent=1 // pred_region
      %v197 = vld [vmem:[#allocation2] sm:$0xff]
      %v198 = vld [vmem:[#allocation2 + $0x8] sm:$0xff]
      %v199 = vadd.f32 %v197, %v198
      %200 = vadd.xlane.f32.xlu0 %v199
      %v201 = vpop.xlane.xlu0 %200
      %v202 = vrot.slane %v201, 4
      %v203 = vadd.f32 %v201, %v202
      %v204 = vrot.slane %v203, 2
      %v205 = vadd.f32 %v203, %v204
      %v206 = vrot.slane %v205, 1
      %v207 = vadd.f32 %v205, %v206
      %s208 = vtos %v207
      %v209 = vstv %s208
      %vm210 = vcmask 0
      %211 = vst.msk [vmem:[#allocation12] sm:$0x1] %vm210, %v209
      %v212 = vld [vmem:[#allocation3] sm:$0xff]
      %v213 = vld [vmem:[#allocation3 + $0x8] sm:$0xff]
      %v214 = vadd.f32 %v212, %v213
      %215 = vadd.xlane.f32.xlu0 %v214
      %v216 = vpop.xlane.xlu0 %215
      %v217 = vrot.slane %v216, 4
      %v218 = vadd.f32 %v216, %v217
      %v219 = vrot.slane %v218, 2
      %v220 = vadd.f32 %v218, %v219
      %v221 = vrot.slane %v220, 1
      %v222 = vadd.f32 %v220, %v221
      %s223 = vtos %v222
      %v224 = vstv %s223
      %225 = vst.msk [vmem:[#allocation13] sm:$0x1] %vm210, %v224
    $region49: #{tpu_custom_call.1} parent=1 // pred_fallthru
      _
    // Predicated region
    $region50: #{tpu_custom_call.1} parent=1 // pred_check
      _
    $region51: #{tpu_custom_call.1} parent=1 // pred_check_branch
      %227 = sbr.rel (0) target = $region53
    $region52: #{tpu_custom_call.1} parent=1 // pred_region
      %229 = vsyncadd [#allocation6], 0
      %s231 = sshll.u32 [#allocation12], 4
      %s232 = int_to_ptr.vmem [resolvable:$true] %s231
      %s233 = sshll.u32 %s6, 4
      %s234 = int_to_ptr.hbm [resolvable:$true] %s233
      %236 = dma.vmem_to_hbm [thread:$0]  %s232, 16, %s234, [#allocation6]
    $region53: #{tpu_custom_call.1} parent=1 // pred_fallthru
      _
    // Predicated region
    $region54: #{tpu_custom_call.1} parent=1 // pred_check
      _
    $region55: #{tpu_custom_call.1} parent=1 // pred_check_branch
      %238 = sbr.rel (0) target = $region57
    $region56: #{tpu_custom_call.1} parent=1 // pred_region
      %240 = vsyncadd [#allocation14], 0
      %s242 = sshll.u32 [#allocation13], 4
      %s243 = int_to_ptr.vmem [resolvable:$true] %s242
      %s244 = sshll.u32 %s7, 4
      %s245 = int_to_ptr.hbm [resolvable:$true] %s244
      %247 = dma.vmem_to_hbm [thread:$0]  %s243, 16, %s245, [#allocation14]
    $region57: #{tpu_custom_call.1} parent=1 // pred_fallthru
      _
    // Predicated region
    $region58: #{tpu_custom_call.1} parent=1 // pred_check
      _
    $region59: #{tpu_custom_call.1} parent=1 // pred_check_branch
      %249 = sbr.rel (0) target = $region61
    $region60: #{tpu_custom_call.1} parent=1 // pred_region
      %251 = dma.done [#allocation6], 16
    $region61: #{tpu_custom_call.1} parent=1 // pred_fallthru
      _
    // Predicated region
    $region62: #{tpu_custom_call.1} parent=1 // pred_check
      _
    $region63: #{tpu_custom_call.1} parent=1 // pred_check_branch
      %253 = sbr.rel (0) target = $region65
    $region64: #{tpu_custom_call.1} parent=1 // pred_region
      %255 = dma.done [#allocation14], 16
    $region65: #{tpu_custom_call.1} parent=1 // pred_fallthru
      _
    %256 = vsyncpa [#allocation5], 1
    %257 = vsyncpa [#allocation8], 1
    %258 = vsyncpa [#allocation11], 1
    %259 = vsyncpa [#allocation6], 1
    %260 = vsyncpa [#allocation14], 1

</llo_original>
